<compile_context>
chip_gen: v7x
topology: tpu7x:2x2x1
jax: 0.10.0
libtpu: 0.0.40
codegen_flags: <defaults>
</compile_context>

<pallas_src>
import functools

import numpy as np
import jax
import jax.numpy as jnp
from jax.experimental import pallas as pl
from jax.experimental.pallas import tpu as pltpu

EPS = 1e-7  # matches Normalize(power=2): x / (||x||_2 + 1e-7)

_VMEM_LIMIT_BYTES = 32 * 1024 * 1024   # scoped limit: required on v5e (16 MiB default), safe on v7x
_VMEM_BUDGET_BYTES = 20 * 1024 * 1024  # kernel footprint budget (2x-buffered accounting)


# ------------------------------ helpers ------------------------------------ #

def _round_up(x, m):
    return ((x + m - 1) // m) * m


def _cdiv(a, b):
    return -(-a // b)


@functools.lru_cache(maxsize=None)
def _row_align():
    """MXU-friendly row-tile alignment: 128 on v5e (4x128x128 MXU), 256 on v6e/v7x."""
    try:
        kind = jax.devices()[0].device_kind.lower()
        if ("v5 lite" in kind) or ("v5e" in kind) or ("v5litepod" in kind):
            return 128
    except Exception:
        pass
    return 256


def _choose_tm(m, c, nc, *, with_weights=True):
    """Pick the row tile.

    * one grid step for small M (<= 256 rows, padded only to the f32 sublane
      minimum of 8)
    * otherwise >= 2 MXU-aligned tiles so the "parallel" grid axis can shard
      across v7x's 2 TensorCores
    * clamped by a VMEM budget that counts the auto-pipeline's 2-deep buffering
      of EVERY operand (weights/biases too, even with a constant index_map).
    """
    align = _row_align()

    def vmem_bytes(tm):
        per_step = tm * c + tm * nc                           # x tile + out tile
        resident = (c * nc + nc * nc + 2 * nc) if with_weights else 0
        return 4 * 2 * (per_step + resident)                  # f32 worst case, 2x buffered

    m8 = _round_up(max(int(m), 1), 8)
    if m8 <= 256:
        tm = m8
    else:
        tm = min(_round_up(_cdiv(m8, 2), align), 2048)
    while vmem_bytes(tm) > _VMEM_BUDGET_BYTES and tm > align:
        tm = max(_round_up(tm // 2, align), align)
    while vmem_bytes(tm) > _VMEM_BUDGET_BYTES and tm > 8:
        tm = max(_round_up(tm // 2, 8), 8)
    return tm


# ----------------------------- Pallas kernels ------------------------------ #

def _mlp_l2norm_kernel(x_ref, w1_ref, b1_ref, w2_ref, b2_ref, o_ref, *, approx_recip):
    """out = l2norm( relu(x @ W1 + b1) @ W2 + b2 ) per row (f32 accumulation)."""
    h = jnp.dot(x_ref[...], w1_ref[...], preferred_element_type=jnp.float32) + b1_ref[...]
    h = jnp.maximum(h, 0.0)
    y = jnp.dot(h.astype(w2_ref.dtype), w2_ref[...],
                preferred_element_type=jnp.float32) + b2_ref[...]
    nrm = jnp.sqrt(jnp.sum(y * y, axis=-1, keepdims=True))
    inv = pl.reciprocal(nrm + EPS, approx=approx_recip)   # EUP slot, not a VPU divide
    o_ref[...] = (y * inv).astype(o_ref.dtype)


def _l2norm_kernel(x_ref, o_ref, *, approx_recip):
    """out = x / (||x||_2 + eps) per row (use_mlp=False path)."""
    x = x_ref[...].astype(jnp.float32)
    nrm = jnp.sqrt(jnp.sum(x * x, axis=-1, keepdims=True))
    inv = pl.reciprocal(nrm + EPS, approx=approx_recip)
    o_ref[...] = (x * inv).astype(o_ref.dtype)


# ------------------------------ Pallas wrappers ----------------------------- #

def mlp_l2norm(x, w1, b1, w2, b2, *, compute_dtype=jnp.bfloat16):
    """x: (M, C); w1: (C, nc); b1: (1, nc) or (nc,); w2: (nc, nc); b2 same as b1.

    Returns (M, nc) = l2norm(relu(x @ W1 + b1) @ W2 + b2).  Meant to be called
    from inside jit so the cast / row-pad / output slice fuse with the kernel.
    """
    m, c = int(x.shape[0]), int(x.shape[1])
    nc = int(w1.shape[1])
    out_dtype = x.dtype

    cd = jnp.dtype(compute_dtype)
    approx = cd == jnp.dtype(jnp.bfloat16)   # approx recip only in low-precision mode

    tm = _choose_tm(m, c, nc, with_weights=True)
    mp = _round_up(m, tm)

    xp = x.astype(cd)
    if mp != m:
        xp = jnp.pad(xp, ((0, mp - m), (0, 0)))
    # Defensive no-op casts / reshapes (create_mlp already pre-casts once).
    w1 = w1.astype(cd)
    w2 = w2.astype(cd)
    b1 = b1.reshape(1, nc).astype(jnp.float32)
    b2 = b2.reshape(1, nc).astype(jnp.float32)

    kernel = functools.partial(_mlp_l2norm_kernel, approx_recip=approx)
    out = pl.pallas_call(
        kernel,
        out_shape=jax.ShapeDtypeStruct((mp, nc), out_dtype),
        grid_spec=pltpu.PrefetchScalarGridSpec(
            num_scalar_prefetch=0,
            grid=(mp // tm,),
            in_specs=[
                # x tile: full channel extent (block == array dim, no 128 pad).
                pl.BlockSpec((tm, c), lambda i: (i, 0)),
                # Constant index_maps -> weights/biases stay resident in VMEM
                # across the row-tile loop (no per-step re-DMA).
                pl.BlockSpec((c, nc), lambda i: (0, 0)),
                pl.BlockSpec((1, nc), lambda i: (0, 0)),
                pl.BlockSpec((nc, nc), lambda i: (0, 0)),
                pl.BlockSpec((1, nc), lambda i: (0, 0)),
            ],
            out_specs=pl.BlockSpec((tm, nc), lambda i: (i, 0)),
        ),
        compiler_params=pltpu.CompilerParams(
            dimension_semantics=("parallel",),
            vmem_limit_bytes=_VMEM_LIMIT_BYTES,
        ),
    )(xp, w1, b1, w2, b2)
    return out[:m] if mp != m else out


def l2norm_rows(x):
    """x: (M, C) -> row-wise L2-normalized (M, C).  Call from inside jit."""
    m, c = int(x.shape[0]), int(x.shape[1])
    tm = _choose_tm(m, c, c, with_weights=False)
    mp = _round_up(m, tm)
    xp = jnp.pad(x, ((0, mp - m), (0, 0))) if mp != m else x

    out = pl.pallas_call(
        functools.partial(_l2norm_kernel, approx_recip=False),
        out_shape=jax.ShapeDtypeStruct((mp, c), x.dtype),
        grid_spec=pltpu.PrefetchScalarGridSpec(
            num_scalar_prefetch=0,
            grid=(mp // tm,),
            in_specs=[pl.BlockSpec((tm, c), lambda i: (i, 0))],
            out_specs=pl.BlockSpec((tm, c), lambda i: (i, 0)),
        ),
        compiler_params=pltpu.CompilerParams(
            dimension_semantics=("parallel",),
            vmem_limit_bytes=_VMEM_LIMIT_BYTES,
        ),
    )(xp)
    return out[:m] if mp != m else out


# ----------------------- jitted per-feature forward ------------------------- #

def _gather_patches(feat, patch_id):
    """NCDHW feature -> sampled (B*P, C) rows.

    Gather in the native layout (only P columns read), then transpose the tiny
    (B, C, P) sample — equivalent to PyTorch's permute->reshape->index->flatten
    without materializing the full channels-last feature map.
    """
    b, c = feat.shape[0], feat.shape[1]
    n = int(np.prod(feat.shape[2:]))
    gathered = jnp.take(feat.reshape(b, c, n), patch_id, axis=2)   # (B, C, P)
    return jnp.transpose(gathered, (0, 2, 1)).reshape(-1, c)       # (B*P, C)


@functools.partial(jax.jit, static_argnames=("compute_dtype",))
def _forward_feature_mlp(feat, patch_id, w1, b1, w2, b2, *, compute_dtype):
    x = _gather_patches(feat, patch_id)
    return mlp_l2norm(x, w1, b1, w2, b2, compute_dtype=compute_dtype)


@jax.jit
def _forward_feature_plain(feat, patch_id):
    return l2norm_rows(_gather_patches(feat, patch_id))


# ------------------------------ PatchSampleF ------------------------------- #

class PatchSampleF:
    """JAX/Pallas port of PatchSampleF (3-D CUT patch sampler)."""

    def __init__(self, use_mlp=False, init_type="normal", init_gain=0.02,
                 nc=256, seed=0, compute_dtype=jnp.bfloat16):
        # compute_dtype: matmul-operand dtype (f32 accumulation + f32 epilogue
        # always).  bf16 is the right default for the bf16-native MXU on
        # v5e/v6e/v7x; pass jnp.float32 for strict f32 parity.
        self.use_mlp = use_mlp
        self.nc = nc
        self.init_type = init_type
        self.init_gain = init_gain
        self.mlp_init = False
        self.compute_dtype = compute_dtype
        self._seed = seed
        self._mlps = {}         # f32 originals (reference / checkpointing)
        self._mlps_kernel = {}  # pre-cast / pre-reshaped once for the kernel

    def create_mlp(self, feature_channels):
        # Deterministic 'normal' init: W ~ N(0, init_gain), b = 0 (init_net).
        key = jax.random.PRNGKey(self._seed)
        cd = jnp.dtype(self.compute_dtype)
        for mlp_id, input_nc in enumerate(feature_channels):
            key, k1, k2 = jax.random.split(key, 3)
            # Weights stored as (in, out) so the kernel computes x @ W directly.
            w1 = self.init_gain * jax.random.normal(k1, (input_nc, self.nc), jnp.float32)
            b1 = jnp.zeros((self.nc,), jnp.float32)
            w2 = self.init_gain * jax.random.normal(k2, (self.nc, self.nc), jnp.float32)
            b2 = jnp.zeros((self.nc,), jnp.float32)
            self._mlps[mlp_id] = (w1, b1, w2, b2)
            # Pre-cast / pre-reshape ONCE (no per-call weight pad/cast traffic).
            self._mlps_kernel[mlp_id] = (w1.astype(cd), b1.reshape(1, self.nc),
                                         w2.astype(cd), b2.reshape(1, self.nc))
        self.mlp_init = True

    def __call__(self, feats, num_patches=64, patch_ids=None, key=None):
        return_ids = []
        return_feats = []
        if self.use_mlp and not self.mlp_init:
            self.create_mlp([int(f.shape[1]) for f in feats])
        if key is None:
            key = jax.random.PRNGKey(self._seed + 1)
        for feat_id, feat in enumerate(feats):
            # feat: (B, C, D, H, W)
            n = int(np.prod(feat.shape[2:]))
            if num_patches > 0:
                if patch_ids is not None:
                    patch_id = jnp.asarray(patch_ids[feat_id], dtype=jnp.int32)
                else:
                    key, sub = jax.random.split(key)
                    perm = jax.random.permutation(sub, n)
                    patch_id = perm[: int(min(num_patches, n))].astype(jnp.int32)
            else:
                # TODO(synk): num_patches==0 branch of the PyTorch module references
                # undefined B/H/W (dead/buggy code); not implemented.
                raise NotImplementedError("num_patches == 0 path not supported")

            if self.use_mlp:
                w1, b1, w2, b2 = self._mlps_kernel[feat_id]
                x_sample = _forward_feature_mlp(feat, patch_id, w1, b1, w2, b2,
                                                compute_dtype=self.compute_dtype)
            else:
                x_sample = _forward_feature_plain(feat, patch_id)

            return_ids.append(patch_id)
            return_feats.append(x_sample)
        return return_feats, return_ids


# --------------------------- pure-JAX reference ----------------------------- #

def _ref_forward(feats, sampler, num_patches, patch_ids):
    outs = []
    for feat_id, feat in enumerate(feats):
        b, c = feat.shape[0], feat.shape[1]
        fr = jnp.transpose(feat, (0, 2, 3, 4, 1)).reshape(b, -1, c)
        pid = jnp.asarray(patch_ids[feat_id], dtype=jnp.int32)
        x = jnp.take(fr, pid, axis=1).reshape(-1, c)
        if sampler.use_mlp:
            w1, b1, w2, b2 = sampler._mlps[feat_id]
            x = jnp.maximum(x @ w1 + b1, 0.0) @ w2 + b2
        nrm = jnp.sqrt(jnp.sum(x * x, axis=-1, keepdims=True))
        outs.append(x / (nrm + EPS))
    return outs


# ----------------------------------- main ----------------------------------- #

if __name__ == "__main__":
    key = jax.random.PRNGKey(0)
    k0, k1, kp = jax.random.split(key, 3)

    # Small 3-D feature maps, NCDHW (as produced by PyTorch Conv3d).
    feats = [
        jax.random.normal(k0, (2, 4, 4, 4, 4), jnp.float32),   # B=2, C=4,  D=H=W=4
        jax.random.normal(k1, (2, 8, 4, 4, 4), jnp.float32),   # B=2, C=8,  D=H=W=4
    ]
    num_patches = 8

    # --- use_mlp=True, strict f32 path (tight tolerance) ----------------------
    sampler_mlp = PatchSampleF(use_mlp=True, nc=32, seed=0,
                               compute_dtype=jnp.float32)
    feats_out, ids_out = sampler_mlp(feats, num_patches=num_patches, key=kp)
    feats_out = [jax.block_until_ready(f) for f in feats_out]

    ref_out = _ref_forward(feats, sampler_mlp, num_patches, ids_out)
    for got, ref in zip(feats_out, ref_out):
        assert got.shape == (2 * num_patches, 32), got.shape
        np.testing.assert_allclose(np.asarray(got), np.asarray(ref),
                                   rtol=1e-5, atol=1e-5)

    # --- use_mlp=False path (l2norm-only Pallas kernel), reuse patch ids ------
    sampler_plain = PatchSampleF(use_mlp=False, nc=32, seed=0)
    feats_out2, ids_out2 = sampler_plain(feats, num_patches=num_patches,
                                         patch_ids=ids_out)
    feats_out2 = [jax.block_until_ready(f) for f in feats_out2]

    ref_out2 = _ref_forward(feats, sampler_plain, num_patches, ids_out)
    for got, ref, feat in zip(feats_out2, ref_out2, feats):
        assert got.shape == (2 * num_patches, feat.shape[1]), got.shape
        np.testing.assert_allclose(np.asarray(got), np.asarray(ref),
                                   rtol=1e-5, atol=1e-5)

    # --- default bf16-MXU path (f32 accumulation), loose tolerance ------------
    sampler_bf16 = PatchSampleF(use_mlp=True, nc=32, seed=0)   # compute_dtype=bf16
    feats_bf16, _ = sampler_bf16(feats, num_patches=num_patches,
                                 patch_ids=ids_out)
    feats_bf16 = [jax.block_until_ready(f) for f in feats_bf16]
    ref_bf16 = _ref_forward(feats, sampler_bf16, num_patches, ids_out)
    for got, ref in zip(feats_bf16, ref_bf16):
        np.testing.assert_allclose(np.asarray(got), np.asarray(ref),
                                   rtol=5e-2, atol=5e-2)

    print("KERNEL_OK")
</pallas_src>

<mosaic_0001>
module attributes {stable_mosaic.version = 11 : i64} {
  func.func @_mlp_l2norm_kernel(%arg0: i32, %arg1: memref<16x4xf32, #tpu.memory_space<vmem>>, %arg2: memref<4x32xf32, #tpu.memory_space<vmem>>, %arg3: memref<1x32xf32, #tpu.memory_space<vmem>>, %arg4: memref<32x32xf32, #tpu.memory_space<vmem>>, %arg5: memref<1x32xf32, #tpu.memory_space<vmem>>, %arg6: memref<16x32xf32, #tpu.memory_space<vmem>>) attributes {dimension_semantics = [#tpu.dimension_semantics<parallel>], iteration_bounds = array<i64: 1>, scalar_prefetch = 0 : i64, scratch_operands = 0 : i64, tpu.core_type = #tpu.core_type<tc>, window_params = [{transform_indices = @transform_0, window_bounds = array<i64: 16, 4>}, {pipeline_mode = #tpu.pipeline_mode<synchronous>, transform_indices = @transform_1, window_bounds = array<i64: 4, 32>}, {pipeline_mode = #tpu.pipeline_mode<synchronous>, transform_indices = @transform_2, window_bounds = array<i64: 1, 32>}, {pipeline_mode = #tpu.pipeline_mode<synchronous>, transform_indices = @transform_3, window_bounds = array<i64: 32, 32>}, {pipeline_mode = #tpu.pipeline_mode<synchronous>, transform_indices = @transform_4, window_bounds = array<i64: 1, 32>}, {transform_indices = @transform_5, window_bounds = array<i64: 16, 32>}]} {
    %c0 = arith.constant 0 : index
    %c0_0 = arith.constant 0 : index
    %0 = vector.load %arg1[%c0, %c0_0] : memref<16x4xf32, #tpu.memory_space<vmem>>, vector<16x4xf32>
    %c0_1 = arith.constant 0 : index
    %c0_2 = arith.constant 0 : index
    %1 = vector.load %arg2[%c0_1, %c0_2] : memref<4x32xf32, #tpu.memory_space<vmem>>, vector<4x32xf32>
    %cst = arith.constant dense<0.000000e+00> : vector<16x32xf32>
    %2 = tpu.matmul %0, %1, %cst {dimension_numbers = #tpu.dot_dimension_numbers<[1], [0], [0], [1], [0, 0, 1, 1], [], []>} : vector<16x4xf32>, vector<4x32xf32>, vector<16x32xf32> -> vector<16x32xf32>
    %c0_3 = arith.constant 0 : index
    %c0_4 = arith.constant 0 : index
    %3 = vector.load %arg3[%c0_3, %c0_4] : memref<1x32xf32, #tpu.memory_space<vmem>>, vector<1x32xf32>
    %4 = vector.broadcast %3 : vector<1x32xf32> to vector<16x32xf32>
    %5 = arith.addf %2, %4 : vector<16x32xf32>
    %cst_5 = arith.constant 0.000000e+00 : f32
    %6 = vector.broadcast %cst_5 : f32 to vector<16x32xf32>
    %7 = arith.maximumf %5, %6 : vector<16x32xf32>
    %c0_6 = arith.constant 0 : index
    %c0_7 = arith.constant 0 : index
    %8 = vector.load %arg4[%c0_6, %c0_7] : memref<32x32xf32, #tpu.memory_space<vmem>>, vector<32x32xf32>
    %cst_8 = arith.constant dense<0.000000e+00> : vector<16x32xf32>
    %9 = tpu.matmul %7, %8, %cst_8 {dimension_numbers = #tpu.dot_dimension_numbers<[1], [0], [0], [1], [0, 0, 1, 1], [], []>} : vector<16x32xf32>, vector<32x32xf32>, vector<16x32xf32> -> vector<16x32xf32>
    %c0_9 = arith.constant 0 : index
    %c0_10 = arith.constant 0 : index
    %10 = vector.load %arg5[%c0_9, %c0_10] : memref<1x32xf32, #tpu.memory_space<vmem>>, vector<1x32xf32>
    %11 = vector.broadcast %10 : vector<1x32xf32> to vector<16x32xf32>
    %12 = arith.addf %9, %11 : vector<16x32xf32>
    %13 = arith.mulf %12, %12 : vector<16x32xf32>
    %cst_11 = arith.constant dense<0.000000e+00> : vector<16xf32>
    %14 = vector.multi_reduction <add>, %13, %cst_11 [1] : vector<16x32xf32> to vector<16xf32>
    %15 = vector.shape_cast %14 : vector<16xf32> to vector<16x1xf32>
    %16 = math.sqrt %15 : vector<16x1xf32>
    %cst_12 = arith.constant 1.000000e-07 : f32
    %17 = vector.broadcast %cst_12 : f32 to vector<16x1xf32>
    %18 = arith.addf %16, %17 : vector<16x1xf32>
    %19 = tpu.reciprocal %18 : vector<16x1xf32> -> vector<16x1xf32>
    %20 = vector.broadcast %19 : vector<16x1xf32> to vector<16x32xf32>
    %21 = arith.mulf %12, %20 : vector<16x32xf32>
    %c0_13 = arith.constant 0 : index
    %c0_14 = arith.constant 0 : index
    %22 = vector.load %arg6[%c0_13, %c0_14] : memref<16x32xf32, #tpu.memory_space<vmem>>, vector<16x32xf32>
    tpu.vector_store %arg6[%c0_13, %c0_14], %21 {strides = array<i32>} : memref<16x32xf32, #tpu.memory_space<vmem>>, vector<16x32xf32>,
    return
  }
  func.func @transform_0(%arg0: i32) -> (i32, i32) {
    %c0_i32 = arith.constant 0 : i32
    %c0_i32_0 = arith.constant 0 : i32
    return %arg0, %c0_i32 : i32, i32
  }
  func.func @transform_1(%arg0: i32) -> (i32, i32) {
    %c0_i32 = arith.constant 0 : i32
    %c0_i32_0 = arith.constant 0 : i32
    %c0_i32_1 = arith.constant 0 : i32
    return %c0_i32, %c0_i32_0 : i32, i32
  }
  func.func @transform_2(%arg0: i32) -> (i32, i32) {
    %c0_i32 = arith.constant 0 : i32
    %c0_i32_0 = arith.constant 0 : i32
    %c0_i32_1 = arith.constant 0 : i32
    return %c0_i32, %c0_i32_0 : i32, i32
  }
  func.func @transform_3(%arg0: i32) -> (i32, i32) {
    %c0_i32 = arith.constant 0 : i32
    %c0_i32_0 = arith.constant 0 : i32
    %c0_i32_1 = arith.constant 0 : i32
    return %c0_i32, %c0_i32_0 : i32, i32
  }
  func.func @transform_4(%arg0: i32) -> (i32, i32) {
    %c0_i32 = arith.constant 0 : i32
    %c0_i32_0 = arith.constant 0 : i32
    %c0_i32_1 = arith.constant 0 : i32
    return %c0_i32, %c0_i32_0 : i32, i32
  }
  func.func @transform_5(%arg0: i32) -> (i32, i32) {
    %c0_i32 = arith.constant 0 : i32
    %c0_i32_0 = arith.constant 0 : i32
    return %arg0, %c0_i32 : i32, i32
  }
}

</mosaic_0001>

<llo_original>
// kernel: _forward_feature_mlp.1
$region0: #{_forward_feature_mlp.1}
  #allocation0 [shape = 'u32[]', space=smem, size = 0x4, offset = 0x4, fixed_abs, tag = 'smem constant byte address 0x4 - core index']
  #allocation1 [shape = 'u32[144,128]{1,0:T(1,128)}', space=vmem, size = 0x12000, scoped, tag = 'internal scratch']
  %s0 = inlined_call_operand.vmem [shape: f32[16,4], index: 0, kind: input, shape index: {}]
  %s1 = inlined_call_operand.vmem [shape: f32[4,32], index: 1, kind: input, shape index: {}]
  %s2 = inlined_call_operand.vmem [shape: f32[1,32], index: 2, kind: input, shape index: {}]
  %s3 = inlined_call_operand.vmem [shape: f32[32,32], index: 3, kind: input, shape index: {}]
  %s4 = inlined_call_operand.vmem [shape: f32[1,32], index: 4, kind: input, shape index: {}]
  %s5 = inlined_call_operand.hbm [shape: f32[16,32], index: 5, kind: output, shape index: {}]
  %s6 = sld [smem:[#allocation0]]
  $region30: #{_forward_feature_mlp.1} parent=0
    _
  %s8 = ssub.s32 1, %s6
  %s9 = scalar_select 0, %s8, %s6
  $region1: #{_forward_feature_mlp.1} parent=0
    #allocation2 [shape = 'u8[8192]{0}', space=vmem, size = 0x2000, scoped, tag = 'output window, operand 0, single buffered']
    #allocation3 [shape = 's32[1]{0}', space=sflag, size = 0x4, scoped, tag = 'scoped memory for _forward_feature_mlp.1']
    %10 = vsyncpa [#allocation3], 0
    // Predicated region
    $region2: #{_forward_feature_mlp.1} parent=1 // pred_check
      _
    $region3: #{_forward_feature_mlp.1} parent=1 // pred_check_branch
      %12 = sbr.rel (0) target = $region5
    $region4: #{_forward_feature_mlp.1} parent=1 // pred_region
      _
    $region5: #{_forward_feature_mlp.1} parent=1 // pred_fallthru
      _
    // Predicated region
    $region6: #{_forward_feature_mlp.1} parent=1 // pred_check
      _
    $region7: #{_forward_feature_mlp.1} parent=1 // pred_check_branch
      %14 = sbr.rel (0) target = $region9
    $region8: #{_forward_feature_mlp.1} parent=1 // pred_region
      _
    $region9: #{_forward_feature_mlp.1} parent=1 // pred_fallthru
      _
    // Predicated region
    $region10: #{_forward_feature_mlp.1} parent=1 // pred_check
      _
    $region11: #{_forward_feature_mlp.1} parent=1 // pred_check_branch
      %16 = sbr.rel (0) target = $region13
    $region12: #{_forward_feature_mlp.1} parent=1 // pred_region
      _
    $region13: #{_forward_feature_mlp.1} parent=1 // pred_fallthru
      _
    // Predicated region
    $region14: #{_forward_feature_mlp.1} parent=1 // pred_check
      _
    $region15: #{_forward_feature_mlp.1} parent=1 // pred_check_branch
      %18 = sbr.rel (0) target = $region17
    $region16: #{_forward_feature_mlp.1} parent=1 // pred_region
      _
    $region17: #{_forward_feature_mlp.1} parent=1 // pred_fallthru
      _
    // Predicated region
    $region18: #{_forward_feature_mlp.1} parent=1 // pred_check
      _
    $region19: #{_forward_feature_mlp.1} parent=1 // pred_check_branch
      %20 = sbr.rel (0) target = $region21
    $region20: #{_forward_feature_mlp.1} parent=1 // pred_region
      _
    $region21: #{_forward_feature_mlp.1} parent=1 // pred_fallthru
      _
    %v21 = vld [vmem:[%s0] sm:$0xff]
    %v22 = vld [vmem:[%s0 + $0x8] sm:$0xff]
    %v23 = vld [vmem:[%s1] sm:$0xf]
    %v24 = vld [vmem:[%s2] sm:$0x1]
    %v26 = vlaneseq
    %v27 = vshrl.u32 %v26, 7
    %v28 = vsub.s32 0, %v27
    %v29 = vrot.slane %v24, %v28
    %vm31 = vcmask 31744
    %v33 = vsel %vm31, %v21, 0
    %v36 = vsel %vm31, %v22, 0
    %vm38 = vcmask 1043456
    %v40 = vsel %vm38, %v23, 0
    %42 = vmatprep.subr.mxu0 0.0
    %43 = vmatpush1.msra.mxu0 %v40
    %44 = vmatprep.subr.mxu0 0.0
    %45 = vmatpush1.msra.mxu0 0.0
    %46 = vmatprep.subr.mxu0 0.0
    %47 = vmatpush1.msra.mxu0 0.0
    %48 = vmatprep.subr.mxu0 0.0
    %49 = vmatpush1.msra.mxu0 0.0
    %50 = vmatprep.subr.mxu0 0.0
    %51 = vmatpush1.msra.mxu0 0.0
    %52 = vmatprep.subr.mxu0 0.0
    %53 = vmatpush1.msra.mxu0 0.0
    %54 = vmatprep.subr.mxu0 0.0
    %55 = vmatpush1.msra.mxu0 0.0
    %56 = vmatprep.subr.mxu0 0.0
    %57 = vmatpush1.msra.mxu0 0.0
    %58 = vmatprep.subr.mxu0 0.0
    %59 = vmatpush1.msra.mxu0 0.0
    %60 = vmatprep.subr.mxu0 0.0
    %61 = vmatpush1.msra.mxu0 0.0
    %62 = vmatprep.subr.mxu0 0.0
    %63 = vmatpush1.msra.mxu0 0.0
    %64 = vmatprep.subr.mxu0 0.0
    %65 = vmatpush1.msra.mxu0 0.0
    %66 = vmatprep.subr.mxu0 0.0
    %67 = vmatpush1.msra.mxu0 0.0
    %68 = vmatprep.subr.mxu0 0.0
    %69 = vmatpush1.msra.mxu0 0.0
    %70 = vmatprep.subr.mxu0 0.0
    %71 = vmatpush1.msra.mxu0 0.0
    %72 = vmatprep.subr.mxu0 0.0
    %73 = vmatpush1.msra.mxu0 0.0
    %74 = vmatprep.subr.mxu0 0.0
    %75 = vmatpush1.msra.mxu0 0.0
    %76 = vmatprep.subr.mxu0 0.0
    %77 = vmatpush1.msra.mxu0 0.0
    %78 = vmatprep.subr.mxu0 0.0
    %79 = vmatpush1.msra.mxu0 0.0
    %80 = vmatprep.subr.mxu0 0.0
    %81 = vmatpush1.msra.mxu0 0.0
    %82 = vmatprep.subr.mxu0 0.0
    %83 = vmatpush1.msra.mxu0 0.0
    %84 = vmatprep.subr.mxu0 0.0
    %85 = vmatpush1.msra.mxu0 0.0
    %86 = vmatprep.subr.mxu0 0.0
    %87 = vmatpush1.msra.mxu0 0.0
    %88 = vmatprep.subr.mxu0 0.0
    %89 = vmatpush1.msra.mxu0 0.0
    %90 = vmatprep.subr.mxu0 0.0
    %91 = vmatpush1.msra.mxu0 0.0
    %92 = vmatprep.subr.mxu0 0.0
    %93 = vmatpush1.msra.mxu0 0.0
    %94 = vmatprep.subr.mxu0 0.0
    %95 = vmatpush1.msra.mxu0 0.0
    %96 = vmatprep.subr.mxu0 0.0
    %97 = vmatpush1.msra.mxu0 0.0
    %98 = vmatprep.subr.mxu0 0.0
    %99 = vmatpush1.msra.mxu0 0.0
    %100 = vmatprep.subr.mxu0 0.0
    %101 = vmatpush1.msra.mxu0 0.0
    %102 = vmatprep.subr.mxu0 0.0
    %103 = vmatpush1.msra.mxu0 0.0
    %104 = vmatprep.subr.mxu0 0.0
    %105 = vmatpush1.msra.mxu0 0.0
    %106 = vmatprep.mubr.f32.mxu0 0.0
    %107 = vmatmul.mubr.f32.gmra.mrb[0].mxu0 %v33
    %v108 = vpop.f32.mrb[0].mxu0
    %v109 = vadd.f32 %v29, %v108
    %v110 = vpop.f32.mrb[0].mxu0
    %111 = vmatprep.mubr.f32.mxu0 0.0
    %112 = vmatmul.mubr.f32.gmra.mrb[0].mxu0 %v36
    %v113 = vpop.f32.mrb[0].mxu0
    %v114 = vadd.f32 %v29, %v113
    %v115 = vpop.f32.mrb[0].mxu0
    %116 = vdwg.mxu0
    %v117 = vmax.f32 %v109, 0.0
    %v118 = vmax.f32 %v114, 0.0
    %v119 = vld [vmem:[%s3] sm:$0xff]
    %v120 = vld [vmem:[%s3 + $0x8] sm:$0xff]
    %v121 = vld [vmem:[%s3 + $0x10] sm:$0xff]
    %v122 = vld [vmem:[%s3 + $0x18] sm:$0xff]
    %v123 = vld [vmem:[%s4] sm:$0x1]
    %v125 = vlaneseq
    %v126 = vshrl.u32 %v125, 7
    %v127 = vsub.s32 0, %v126
    %v128 = vrot.slane %v123, %v127
    %vm130 = vcmask 261120
    %v132 = vsel %vm130, %v117, 0
    %v135 = vsel %vm130, %v118, 0
    %137 = vmatprep.subr.mxu0 0.0
    %138 = vmatpush1.msra.mxu0 %v119
    %139 = vmatprep.subr.mxu0 0.0
    %140 = vmatpush1.msra.mxu0 %v120
    %141 = vmatprep.subr.mxu0 0.0
    %142 = vmatpush1.msra.mxu0 %v121
    %143 = vmatprep.subr.mxu0 0.0
    %144 = vmatpush1.msra.mxu0 %v122
    %145 = vmatprep.subr.mxu0 0.0
    %146 = vmatpush1.msra.mxu0 0.0
    %147 = vmatprep.subr.mxu0 0.0
    %148 = vmatpush1.msra.mxu0 0.0
    %149 = vmatprep.subr.mxu0 0.0
    %150 = vmatpush1.msra.mxu0 0.0
    %151 = vmatprep.subr.mxu0 0.0
    %152 = vmatpush1.msra.mxu0 0.0
    %153 = vmatprep.subr.mxu0 0.0
    %154 = vmatpush1.msra.mxu0 0.0
    %155 = vmatprep.subr.mxu0 0.0
    %156 = vmatpush1.msra.mxu0 0.0
    %157 = vmatprep.subr.mxu0 0.0
    %158 = vmatpush1.msra.mxu0 0.0
    %159 = vmatprep.subr.mxu0 0.0
    %160 = vmatpush1.msra.mxu0 0.0
    %161 = vmatprep.subr.mxu0 0.0
    %162 = vmatpush1.msra.mxu0 0.0
    %163 = vmatprep.subr.mxu0 0.0
    %164 = vmatpush1.msra.mxu0 0.0
    %165 = vmatprep.subr.mxu0 0.0
    %166 = vmatpush1.msra.mxu0 0.0
    %167 = vmatprep.subr.mxu0 0.0
    %168 = vmatpush1.msra.mxu0 0.0
    %169 = vmatprep.subr.mxu0 0.0
    %170 = vmatpush1.msra.mxu0 0.0
    %171 = vmatprep.subr.mxu0 0.0
    %172 = vmatpush1.msra.mxu0 0.0
    %173 = vmatprep.subr.mxu0 0.0
    %174 = vmatpush1.msra.mxu0 0.0
    %175 = vmatprep.subr.mxu0 0.0
    %176 = vmatpush1.msra.mxu0 0.0
    %177 = vmatprep.subr.mxu0 0.0
    %178 = vmatpush1.msra.mxu0 0.0
    %179 = vmatprep.subr.mxu0 0.0
    %180 = vmatpush1.msra.mxu0 0.0
    %181 = vmatprep.subr.mxu0 0.0
    %182 = vmatpush1.msra.mxu0 0.0
    %183 = vmatprep.subr.mxu0 0.0
    %184 = vmatpush1.msra.mxu0 0.0
    %185 = vmatprep.subr.mxu0 0.0
    %186 = vmatpush1.msra.mxu0 0.0
    %187 = vmatprep.subr.mxu0 0.0
    %188 = vmatpush1.msra.mxu0 0.0
    %189 = vmatprep.subr.mxu0 0.0
    %190 = vmatpush1.msra.mxu0 0.0
    %191 = vmatprep.subr.mxu0 0.0
    %192 = vmatpush1.msra.mxu0 0.0
    %193 = vmatprep.subr.mxu0 0.0
    %194 = vmatpush1.msra.mxu0 0.0
    %195 = vmatprep.subr.mxu0 0.0
    %196 = vmatpush1.msra.mxu0 0.0
    %197 = vmatprep.subr.mxu0 0.0
    %198 = vmatpush1.msra.mxu0 0.0
    %199 = vmatprep.subr.mxu0 0.0
    %200 = vmatpush1.msra.mxu0 0.0
    %201 = vmatprep.mubr.f32.mxu0 0.0
    %202 = vmatmul.mubr.f32.gmra.mrb[0].mxu0 %v132
    %v203 = vpop.f32.mrb[0].mxu0
    %v204 = vadd.f32 %v128, %v203
    %v205 = vpop.f32.mrb[0].mxu0
    %206 = vmatprep.mubr.f32.mxu0 0.0
    %207 = vmatmul.mubr.f32.gmra.mrb[0].mxu0 %v135
    %v208 = vpop.f32.mrb[0].mxu0
    %v209 = vadd.f32 %v128, %v208
    %v210 = vpop.f32.mrb[0].mxu0
    %211 = vdwg.mxu0
    %v212 = vmul.f32 %v204, %v204
    %v213 = vmul.f32 %v209, %v209
    %v214 = vsel %vm130, %v212, 0.0
    %215 = vadd.xlane.f32.xlu0 %v214
    %v216 = vpop.xlane.xlu0 %215
    %v217 = vsel %vm130, %v213, 0.0
    %218 = vadd.xlane.f32.xlu0 %v217
    %v219 = vpop.xlane.xlu0 %218
    %v220 = vrsqrt.pop %v216
    %v221 = vmul.f32 %v216, %v220
    %vm222 = vcmp.eq.f32.partialorder %v216, inf
    %v223 = vsel %vm222, %v216, %v221
    %vm224 = vcmp.eq.f32.partialorder %v216, 0.0
    %v225 = vand.u32 %v216, 2147483648
    %v226 = vsel %vm224, %v225, %v223
    %v227 = vrsqrt.pop %v219
    %v228 = vmul.f32 %v219, %v227
    %vm229 = vcmp.eq.f32.partialorder %v219, inf
    %v230 = vsel %vm229, %v219, %v228
    %vm231 = vcmp.eq.f32.partialorder %v219, 0.0
    %v232 = vand.u32 %v219, 2147483648
    %v233 = vsel %vm231, %v232, %v230
    %v234 = vadd.f32 %v226, 1e-07
    %v235 = vadd.f32 %v233, 1e-07
    %v236 = vrcp.pop %v234
    %v237 = vrcp.pop %v235
    %v238 = vmul.f32 %v204, %v236
    %v239 = vmul.f32 %v209, %v237
    %240 = vst.msk [vmem:[#allocation2] sm:$0xff] %vm130, %v238
    %241 = vst.msk [vmem:[#allocation2 + $0x8] sm:$0xff] %vm130, %v239
    // Predicated region
    $region22: #{_forward_feature_mlp.1} parent=1 // pred_check
      _
    $region23: #{_forward_feature_mlp.1} parent=1 // pred_check_branch
      %243 = sbr.rel (0) target = $region25
    $region24: #{_forward_feature_mlp.1} parent=1 // pred_region
      %s245 = ssub.s32 256, 256
      %246 = vsyncadd [#allocation3], %s245
      %s247 = sshll.u32 [#allocation2], 4
      %s248 = int_to_ptr.vmem [resolvable:$true] %s247
      %253 = dma.vmem_to_hbm [thread:$0]  %s248, 256, %s5, [#allocation3], 128, 128, 8
    $region25: #{_forward_feature_mlp.1} parent=1 // pred_fallthru
      _
    // Predicated region
    $region26: #{_forward_feature_mlp.1} parent=1 // pred_check
      _
    $region27: #{_forward_feature_mlp.1} parent=1 // pred_check_branch
      %255 = sbr.rel (0) target = $region29
    $region28: #{_forward_feature_mlp.1} parent=1 // pred_region
      %256 = dma.done [#allocation3], 256
    $region29: #{_forward_feature_mlp.1} parent=1 // pred_fallthru
      _
    %257 = vsyncpa [#allocation3], 1

</llo_original>
